<compile_context>
chip_gen: v6e
topology: v6e:2x2x1
jax: 0.10.0
libtpu: 0.0.40
codegen_flags: <defaults>
</compile_context>

<pallas_src>
import math

import jax
import jax.numpy as jnp
from jax.experimental import pallas as pl
from jax.experimental.pallas import tpu as pltpu


_VMEM_BUDGET_BYTES = 48 * 1024 * 1024  # stay under v7x's 64 MiB physical VMEM


def _mlp_kernel(x_ref, w1_ref, b1_ref, w2_ref, b2_ref, o_ref):
    # x_ref: (TR, C_in), w1_ref: (C_in, H), b1_ref: (1, H)
    # w2_ref: (H, C_out), b2_ref: (1, C_out), o_ref: (TR, C_out)

    # fc1 on the MXU in native dtype, accumulate in f32.
    h = jnp.dot(x_ref[...], w1_ref[...], preferred_element_type=jnp.float32)
    h = h + b1_ref[...].astype(jnp.float32)

    # GELU (exact / erf form, matching torch.nn.GELU default), in f32.
    # erf goes to the EUP -> it overlaps with MXU/VPU work.
    h = 0.5 * h * (1.0 + jax.lax.erf(h * (1.0 / math.sqrt(2.0))))

    # Dropout(p=0.0) is identity in eval / with drop=0.0 — nothing to do.

    # fc2: cast activations back to the weight dtype so bf16 weights keep the
    # bf16 MXU path; accumulate in f32.
    y = jnp.dot(h.astype(w2_ref.dtype), w2_ref[...],
                preferred_element_type=jnp.float32)
    y = y + b2_ref[...].astype(jnp.float32)

    o_ref[...] = y.astype(o_ref.dtype)


def mlp_forward(x, w1, b1, w2, b2, *, row_tile=512):
    """x: (B, N, C_in) -> (B, N, C_out).  Linear weights stored as (in, out)."""
    B, N, C_in = x.shape
    H = w1.shape[1]
    C_out = w2.shape[1]

    rows = B * N
    x2d = x.reshape(rows, C_in)

    in_bytes = x.dtype.itemsize
    w_bytes = w1.dtype.itemsize

    # Shrink the row tile for small inputs (avoids padding entirely) and keep
    # it a multiple of 8 (sublane granularity).
    rt = min(row_tile, max(8, ((rows + 7) // 8) * 8))
    rt = max(8, (rt // 8) * 8)

    def vmem_est(tile):
        tiles = 2 * tile * (C_in + C_out) * in_bytes                 # double-buffered x / out tiles
        weights = 2 * (C_in * H + H * C_out + H + C_out) * w_bytes   # resident (double-buffered) W1/W2/b1/b2
        interm = tile * (H + C_out) * 4                              # f32 intermediates
        return tiles + weights + interm

    # If resident weights + tiles would blow the VMEM budget, shrink the row
    # tile rather than the (output-N / reduction) dims.
    while rt > 64 and vmem_est(rt) > _VMEM_BUDGET_BYTES:
        rt //= 2

    padded_rows = pl.cdiv(rows, rt) * rt
    if padded_rows != rows:
        # Remainder rows: pad once in the wrapper (minor vs the matmul cost);
        # rows are independent, so padded rows are simply discarded below.
        x2d = jnp.pad(x2d, ((0, padded_rows - rows), (0, 0)))

    grid = (padded_rows // rt,)

    est = vmem_est(rt)
    cp_kwargs = dict(dimension_semantics=("parallel",))
    if est > 16 * 1024 * 1024:  # above the smallest default scoped-VMEM limit
        cp_kwargs["vmem_limit_bytes"] = min(
            max(int(est * 1.25), 32 * 1024 * 1024), 64 * 1024 * 1024)

    cost = pl.CostEstimate(
        flops=2 * padded_rows * (C_in * H + H * C_out),
        transcendentals=padded_rows * H,
        bytes_accessed=(padded_rows * C_in * in_bytes
                        + (C_in * H + H * C_out + H + C_out) * w_bytes
                        + padded_rows * C_out * x.dtype.itemsize),
    )

    out2d = pl.pallas_call(
        _mlp_kernel,
        out_shape=jax.ShapeDtypeStruct((padded_rows, C_out), x.dtype),
        grid_spec=pltpu.PrefetchScalarGridSpec(
            num_scalar_prefetch=0,
            grid=grid,
            in_specs=[
                pl.BlockSpec((rt, C_in), lambda i: (i, 0)),    # x row tile
                pl.BlockSpec((C_in, H), lambda i: (0, 0)),     # W1 (resident)
                pl.BlockSpec((1, H), lambda i: (0, 0)),        # b1
                pl.BlockSpec((H, C_out), lambda i: (0, 0)),    # W2 (resident)
                pl.BlockSpec((1, C_out), lambda i: (0, 0)),    # b2
            ],
            out_specs=pl.BlockSpec((rt, C_out), lambda i: (i, 0)),
        ),
        compiler_params=pltpu.CompilerParams(**cp_kwargs),
        cost_estimate=cost,
    )(x2d, w1, b1, w2, b2)

    if padded_rows != rows:
        out2d = out2d[:rows]
    return out2d.reshape(B, N, C_out)


def init_mlp_params(key, in_features, hidden_features=None, out_features=None,
                    dtype=jnp.float32):
    """Deterministic init mimicking nn.Linear defaults (uniform +/- 1/sqrt(fan_in))."""
    out_features = out_features or in_features
    hidden_features = hidden_features or in_features
    k1, k2, k3, k4 = jax.random.split(key, 4)

    bound1 = 1.0 / math.sqrt(in_features)
    w1 = jax.random.uniform(k1, (in_features, hidden_features),
                            minval=-bound1, maxval=bound1, dtype=dtype)
    b1 = jax.random.uniform(k2, (1, hidden_features),
                            minval=-bound1, maxval=bound1, dtype=dtype)

    bound2 = 1.0 / math.sqrt(hidden_features)
    w2 = jax.random.uniform(k3, (hidden_features, out_features),
                            minval=-bound2, maxval=bound2, dtype=dtype)
    b2 = jax.random.uniform(k4, (1, out_features),
                            minval=-bound2, maxval=bound2, dtype=dtype)
    return w1, b1, w2, b2


def mlp_reference(x, w1, b1, w2, b2):
    h = jnp.einsum("bnc,ch->bnh", x, w1) + b1[0]
    h = 0.5 * h * (1.0 + jax.lax.erf(h / math.sqrt(2.0)))
    y = jnp.einsum("bnh,ho->bno", h, w2) + b2[0]
    return y


if __name__ == "__main__":
    key = jax.random.PRNGKey(0)
    kx, kp = jax.random.split(key)

    B, N, C_in = 2, 8, 4          # small token tensor (batch, seq, channels)
    hidden = 32
    x = jax.random.normal(kx, (B, N, C_in), dtype=jnp.float32)

    w1, b1, w2, b2 = init_mlp_params(kp, C_in, hidden_features=hidden)

    out = mlp_forward(x, w1, b1, w2, b2)
    out = jax.block_until_ready(out)

    ref = mlp_reference(x, w1, b1, w2, b2)
    assert out.shape == (B, N, C_in), out.shape
    assert jnp.allclose(out, ref, atol=1e-5, rtol=1e-5), "mismatch vs reference"

    print("KERNEL_OK")
</pallas_src>

<mosaic_0001>
module attributes {stable_mosaic.version = 11 : i64} {
  func.func @_mlp_kernel(%arg0: i32, %arg1: memref<16x4xf32, #tpu.memory_space<vmem>>, %arg2: memref<4x32xf32, #tpu.memory_space<vmem>>, %arg3: memref<1x32xf32, #tpu.memory_space<vmem>>, %arg4: memref<32x4xf32, #tpu.memory_space<vmem>>, %arg5: memref<1x4xf32, #tpu.memory_space<vmem>>, %arg6: memref<16x4xf32, #tpu.memory_space<vmem>>) attributes {dimension_semantics = [#tpu.dimension_semantics<parallel>], iteration_bounds = array<i64: 1>, scalar_prefetch = 0 : i64, scratch_operands = 0 : i64, tpu.core_type = #tpu.core_type<tc>, window_params = [{transform_indices = @transform_0, window_bounds = array<i64: 16, 4>}, {pipeline_mode = #tpu.pipeline_mode<synchronous>, transform_indices = @transform_1, window_bounds = array<i64: 4, 32>}, {pipeline_mode = #tpu.pipeline_mode<synchronous>, transform_indices = @transform_2, window_bounds = array<i64: 1, 32>}, {pipeline_mode = #tpu.pipeline_mode<synchronous>, transform_indices = @transform_3, window_bounds = array<i64: 32, 4>}, {pipeline_mode = #tpu.pipeline_mode<synchronous>, transform_indices = @transform_4, window_bounds = array<i64: 1, 4>}, {transform_indices = @transform_5, window_bounds = array<i64: 16, 4>}]} {
    %c0 = arith.constant 0 : index
    %c0_0 = arith.constant 0 : index
    %0 = vector.load %arg1[%c0, %c0_0] : memref<16x4xf32, #tpu.memory_space<vmem>>, vector<16x4xf32>
    %c0_1 = arith.constant 0 : index
    %c0_2 = arith.constant 0 : index
    %1 = vector.load %arg2[%c0_1, %c0_2] : memref<4x32xf32, #tpu.memory_space<vmem>>, vector<4x32xf32>
    %cst = arith.constant dense<0.000000e+00> : vector<16x32xf32>
    %2 = tpu.matmul %0, %1, %cst {dimension_numbers = #tpu.dot_dimension_numbers<[1], [0], [0], [1], [0, 0, 1, 1], [], []>} : vector<16x4xf32>, vector<4x32xf32>, vector<16x32xf32> -> vector<16x32xf32>
    %c0_3 = arith.constant 0 : index
    %c0_4 = arith.constant 0 : index
    %3 = vector.load %arg3[%c0_3, %c0_4] : memref<1x32xf32, #tpu.memory_space<vmem>>, vector<1x32xf32>
    %4 = vector.broadcast %3 : vector<1x32xf32> to vector<16x32xf32>
    %5 = arith.addf %2, %4 : vector<16x32xf32>
    %cst_5 = arith.constant 5.000000e-01 : f32
    %6 = vector.broadcast %cst_5 : f32 to vector<16x32xf32>
    %7 = arith.mulf %6, %5 : vector<16x32xf32>
    %cst_6 = arith.constant 0.707106769 : f32
    %8 = vector.broadcast %cst_6 : f32 to vector<16x32xf32>
    %9 = arith.mulf %5, %8 : vector<16x32xf32>
    %10 = math.erf %9 : vector<16x32xf32>
    %cst_7 = arith.constant 1.000000e+00 : f32
    %11 = vector.broadcast %cst_7 : f32 to vector<16x32xf32>
    %12 = arith.addf %11, %10 : vector<16x32xf32>
    %13 = arith.mulf %7, %12 : vector<16x32xf32>
    %c0_8 = arith.constant 0 : index
    %c0_9 = arith.constant 0 : index
    %14 = vector.load %arg4[%c0_8, %c0_9] : memref<32x4xf32, #tpu.memory_space<vmem>>, vector<32x4xf32>
    %cst_10 = arith.constant dense<0.000000e+00> : vector<16x4xf32>
    %15 = tpu.matmul %13, %14, %cst_10 {dimension_numbers = #tpu.dot_dimension_numbers<[1], [0], [0], [1], [0, 0, 1, 1], [], []>} : vector<16x32xf32>, vector<32x4xf32>, vector<16x4xf32> -> vector<16x4xf32>
    %c0_11 = arith.constant 0 : index
    %c0_12 = arith.constant 0 : index
    %16 = vector.load %arg5[%c0_11, %c0_12] : memref<1x4xf32, #tpu.memory_space<vmem>>, vector<1x4xf32>
    %17 = vector.broadcast %16 : vector<1x4xf32> to vector<16x4xf32>
    %18 = arith.addf %15, %17 : vector<16x4xf32>
    %c0_13 = arith.constant 0 : index
    %c0_14 = arith.constant 0 : index
    %19 = vector.load %arg6[%c0_13, %c0_14] : memref<16x4xf32, #tpu.memory_space<vmem>>, vector<16x4xf32>
    tpu.vector_store %arg6[%c0_13, %c0_14], %18 {strides = array<i32>} : memref<16x4xf32, #tpu.memory_space<vmem>>, vector<16x4xf32>,
    return
  }
  func.func @transform_0(%arg0: i32) -> (i32, i32) {
    %c0_i32 = arith.constant 0 : i32
    %c0_i32_0 = arith.constant 0 : i32
    return %arg0, %c0_i32 : i32, i32
  }
  func.func @transform_1(%arg0: i32) -> (i32, i32) {
    %c0_i32 = arith.constant 0 : i32
    %c0_i32_0 = arith.constant 0 : i32
    %c0_i32_1 = arith.constant 0 : i32
    return %c0_i32, %c0_i32_0 : i32, i32
  }
  func.func @transform_2(%arg0: i32) -> (i32, i32) {
    %c0_i32 = arith.constant 0 : i32
    %c0_i32_0 = arith.constant 0 : i32
    %c0_i32_1 = arith.constant 0 : i32
    return %c0_i32, %c0_i32_0 : i32, i32
  }
  func.func @transform_3(%arg0: i32) -> (i32, i32) {
    %c0_i32 = arith.constant 0 : i32
    %c0_i32_0 = arith.constant 0 : i32
    %c0_i32_1 = arith.constant 0 : i32
    return %c0_i32, %c0_i32_0 : i32, i32
  }
  func.func @transform_4(%arg0: i32) -> (i32, i32) {
    %c0_i32 = arith.constant 0 : i32
    %c0_i32_0 = arith.constant 0 : i32
    %c0_i32_1 = arith.constant 0 : i32
    return %c0_i32, %c0_i32_0 : i32, i32
  }
  func.func @transform_5(%arg0: i32) -> (i32, i32) {
    %c0_i32 = arith.constant 0 : i32
    %c0_i32_0 = arith.constant 0 : i32
    return %arg0, %c0_i32 : i32, i32
  }
}

</mosaic_0001>

<llo_original>
// kernel: tpu_custom_call.1
$region0: #{tpu_custom_call.1}
  #allocation0 [shape = 'u32[]', space=smem, size = 0x4, offset = 0x4, fixed_abs, tag = 'smem constant byte address 0x4 - core index']
  #allocation1 [shape = 'u32[144,128]{1,0:T(1,128)}', space=vmem, size = 0x12000, scoped, tag = 'internal scratch']
  %s0 = inlined_call_operand.vmem [shape: f32[16,4], index: 0, kind: input, shape index: {}]
  %s1 = inlined_call_operand.vmem [shape: f32[4,32], index: 1, kind: input, shape index: {}]
  %s2 = inlined_call_operand.vmem [shape: f32[1,32], index: 2, kind: input, shape index: {}]
  %s3 = inlined_call_operand.vmem [shape: f32[32,4], index: 3, kind: input, shape index: {}]
  %s4 = inlined_call_operand.vmem [shape: f32[1,4], index: 4, kind: input, shape index: {}]
  %s5 = inlined_call_operand.vmem [shape: f32[16,4], index: 5, kind: output, shape index: {}]
  %s6 = sld [smem:[#allocation0]]
  $region30: #{tpu_custom_call.1} parent=0
    _
  %s8 = ssub.s32 1, %s6
  %s9 = scalar_select 0, %s8, %s6
  // Predicated region
  $region2: #{tpu_custom_call.1} parent=0 // pred_check
    _
  $region3: #{tpu_custom_call.1} parent=0 // pred_check_branch
    %11 = sbr.rel (0) target = $region5
  $region4: #{tpu_custom_call.1} parent=0 // pred_region
    _
  $region5: #{tpu_custom_call.1} parent=0 // pred_fallthru
    _
  // Predicated region
  $region6: #{tpu_custom_call.1} parent=0 // pred_check
    _
  $region7: #{tpu_custom_call.1} parent=0 // pred_check_branch
    %13 = sbr.rel (0) target = $region9
  $region8: #{tpu_custom_call.1} parent=0 // pred_region
    _
  $region9: #{tpu_custom_call.1} parent=0 // pred_fallthru
    _
  // Predicated region
  $region10: #{tpu_custom_call.1} parent=0 // pred_check
    _
  $region11: #{tpu_custom_call.1} parent=0 // pred_check_branch
    %15 = sbr.rel (0) target = $region13
  $region12: #{tpu_custom_call.1} parent=0 // pred_region
    _
  $region13: #{tpu_custom_call.1} parent=0 // pred_fallthru
    _
  // Predicated region
  $region14: #{tpu_custom_call.1} parent=0 // pred_check
    _
  $region15: #{tpu_custom_call.1} parent=0 // pred_check_branch
    %17 = sbr.rel (0) target = $region17
  $region16: #{tpu_custom_call.1} parent=0 // pred_region
    _
  $region17: #{tpu_custom_call.1} parent=0 // pred_fallthru
    _
  // Predicated region
  $region18: #{tpu_custom_call.1} parent=0 // pred_check
    _
  $region19: #{tpu_custom_call.1} parent=0 // pred_check_branch
    %19 = sbr.rel (0) target = $region21
  $region20: #{tpu_custom_call.1} parent=0 // pred_region
    _
  $region21: #{tpu_custom_call.1} parent=0 // pred_fallthru
    _
  %v20 = vld [vmem:[%s0] sm:$0xff]
  %v21 = vld [vmem:[%s0 + $0x8] sm:$0xff]
  %v22 = vld [vmem:[%s1] sm:$0xf]
  %v23 = vld [vmem:[%s2] sm:$0x1]
  %v25 = vlaneseq
  %v26 = vshrl.u32 %v25, 7
  %v27 = vsub.s32 0, %v26
  %v28 = vrot.slane %v23, %v27
  %vm30 = vcmask 31744
  %v32 = vsel %vm30, %v20, 0
  %v35 = vsel %vm30, %v21, 0
  %vm37 = vcmask 1043456
  %v39 = vsel %vm37, %v22, 0
  %41 = vmatprep.subr.mxu0 0.0
  %42 = vmatpush1.msra.mxu0 0.0
  %43 = vmatprep.subr.mxu0 0.0
  %44 = vmatpush1.msra.mxu0 0.0
  %45 = vmatprep.subr.mxu0 0.0
  %46 = vmatpush1.msra.mxu0 0.0
  %47 = vmatprep.subr.mxu0 0.0
  %48 = vmatpush1.msra.mxu0 0.0
  %49 = vmatprep.subr.mxu0 0.0
  %50 = vmatpush1.msra.mxu0 0.0
  %51 = vmatprep.subr.mxu0 0.0
  %52 = vmatpush1.msra.mxu0 0.0
  %53 = vmatprep.subr.mxu0 0.0
  %54 = vmatpush1.msra.mxu0 0.0
  %55 = vmatprep.subr.mxu0 0.0
  %56 = vmatpush1.msra.mxu0 0.0
  %57 = vmatprep.subr.mxu0 0.0
  %58 = vmatpush1.msra.mxu0 0.0
  %59 = vmatprep.subr.mxu0 0.0
  %60 = vmatpush1.msra.mxu0 0.0
  %61 = vmatprep.subr.mxu0 0.0
  %62 = vmatpush1.msra.mxu0 0.0
  %63 = vmatprep.subr.mxu0 0.0
  %64 = vmatpush1.msra.mxu0 0.0
  %65 = vmatprep.subr.mxu0 0.0
  %66 = vmatpush1.msra.mxu0 0.0
  %67 = vmatprep.subr.mxu0 0.0
  %68 = vmatpush1.msra.mxu0 0.0
  %69 = vmatprep.subr.mxu0 0.0
  %70 = vmatpush1.msra.mxu0 0.0
  %71 = vmatprep.subr.mxu0 0.0
  %72 = vmatpush1.msra.mxu0 %v39
  %73 = vmatprep.subr.mxu0 0.0
  %74 = vmatpush2.msra.mxu0 0.0
  %75 = vmatprep.subr.mxu0 0.0
  %76 = vmatpush2.msra.mxu0 0.0
  %77 = vmatprep.subr.mxu0 0.0
  %78 = vmatpush2.msra.mxu0 0.0
  %79 = vmatprep.subr.mxu0 0.0
  %80 = vmatpush2.msra.mxu0 0.0
  %81 = vmatprep.subr.mxu0 0.0
  %82 = vmatpush2.msra.mxu0 0.0
  %83 = vmatprep.subr.mxu0 0.0
  %84 = vmatpush2.msra.mxu0 0.0
  %85 = vmatprep.subr.mxu0 0.0
  %86 = vmatpush2.msra.mxu0 0.0
  %87 = vmatprep.subr.mxu0 0.0
  %88 = vmatpush2.msra.mxu0 0.0
  %89 = vmatprep.subr.mxu0 0.0
  %90 = vmatpush2.msra.mxu0 0.0
  %91 = vmatprep.subr.mxu0 0.0
  %92 = vmatpush2.msra.mxu0 0.0
  %93 = vmatprep.subr.mxu0 0.0
  %94 = vmatpush2.msra.mxu0 0.0
  %95 = vmatprep.subr.mxu0 0.0
  %96 = vmatpush2.msra.mxu0 0.0
  %97 = vmatprep.subr.mxu0 0.0
  %98 = vmatpush2.msra.mxu0 0.0
  %99 = vmatprep.subr.mxu0 0.0
  %100 = vmatpush2.msra.mxu0 0.0
  %101 = vmatprep.subr.mxu0 0.0
  %102 = vmatpush2.msra.mxu0 0.0
  %103 = vmatprep.subr.mxu0 0.0
  %104 = vmatpush2.msra.mxu0 0.0
  %105 = vmatprep.mubr.f32.mxu0 0.0
  %106 = vmatmul.mubr.f32.gmra.mxu0 %v32
  %v107 = vpop.f32.mrf.mxu0
  %v108 = vadd.f32 %v28, %v107
  %v109 = vpop.f32.mrf.mxu0
  %110 = vmatprep.mubr.f32.mxu0 0.0
  %111 = vmatmul.mubr.f32.gmra.mxu0 %v35
  %v112 = vpop.f32.mrf.mxu0
  %v113 = vadd.f32 %v28, %v112
  %v114 = vpop.f32.mrf.mxu0
  %115 = vdwg.mxu0
  %v116 = vmul.f32 %v108, 0.5
  %v117 = vmul.f32 %v113, 0.5
  %v118 = vmul.f32 %v108, 0.70710677
  %v119 = vmul.f32 %v113, 0.70710677
  %v120 = verf.f32.pop %v118
  %v121 = verf.f32.pop %v119
  %v122 = vadd.f32 %v120, 1.0
  %v123 = vadd.f32 %v121, 1.0
  %v124 = vmul.f32 %v116, %v122
  %v125 = vmul.f32 %v117, %v123
  %v126 = vld [vmem:[%s3] sm:$0xff]
  %v127 = vld [vmem:[%s3 + $0x8] sm:$0xff]
  %v128 = vld [vmem:[%s3 + $0x10] sm:$0xff]
  %v129 = vld [vmem:[%s3 + $0x18] sm:$0xff]
  %v130 = vld [vmem:[%s4] sm:$0x1]
  %v132 = vlaneseq
  %v133 = vshrl.u32 %v132, 7
  %v134 = vsub.s32 0, %v133
  %v135 = vrot.slane %v130, %v134
  %vm137 = vcmask 261120
  %v139 = vsel %vm137, %v124, 0
  %v142 = vsel %vm137, %v125, 0
  %144 = vmatprep.subr.mxu0 0.0
  %145 = vmatpush1.msra.mxu0 0.0
  %146 = vmatprep.subr.mxu0 0.0
  %147 = vmatpush1.msra.mxu0 0.0
  %148 = vmatprep.subr.mxu0 0.0
  %149 = vmatpush1.msra.mxu0 0.0
  %150 = vmatprep.subr.mxu0 0.0
  %151 = vmatpush1.msra.mxu0 0.0
  %152 = vmatprep.subr.mxu0 0.0
  %153 = vmatpush1.msra.mxu0 0.0
  %154 = vmatprep.subr.mxu0 0.0
  %155 = vmatpush1.msra.mxu0 0.0
  %156 = vmatprep.subr.mxu0 0.0
  %157 = vmatpush1.msra.mxu0 0.0
  %158 = vmatprep.subr.mxu0 0.0
  %159 = vmatpush1.msra.mxu0 0.0
  %160 = vmatprep.subr.mxu0 0.0
  %161 = vmatpush1.msra.mxu0 0.0
  %162 = vmatprep.subr.mxu0 0.0
  %163 = vmatpush1.msra.mxu0 0.0
  %164 = vmatprep.subr.mxu0 0.0
  %165 = vmatpush1.msra.mxu0 0.0
  %166 = vmatprep.subr.mxu0 0.0
  %167 = vmatpush1.msra.mxu0 0.0
  %168 = vmatprep.subr.mxu0 0.0
  %169 = vmatpush1.msra.mxu0 %v129
  %170 = vmatprep.subr.mxu0 0.0
  %171 = vmatpush1.msra.mxu0 %v128
  %172 = vmatprep.subr.mxu0 0.0
  %173 = vmatpush1.msra.mxu0 %v127
  %174 = vmatprep.subr.mxu0 0.0
  %175 = vmatpush1.msra.mxu0 %v126
  %176 = vmatprep.subr.mxu0 0.0
  %177 = vmatpush2.msra.mxu0 0.0
  %178 = vmatprep.subr.mxu0 0.0
  %179 = vmatpush2.msra.mxu0 0.0
  %180 = vmatprep.subr.mxu0 0.0
  %181 = vmatpush2.msra.mxu0 0.0
  %182 = vmatprep.subr.mxu0 0.0
  %183 = vmatpush2.msra.mxu0 0.0
  %184 = vmatprep.subr.mxu0 0.0
  %185 = vmatpush2.msra.mxu0 0.0
  %186 = vmatprep.subr.mxu0 0.0
  %187 = vmatpush2.msra.mxu0 0.0
  %188 = vmatprep.subr.mxu0 0.0
  %189 = vmatpush2.msra.mxu0 0.0
  %190 = vmatprep.subr.mxu0 0.0
  %191 = vmatpush2.msra.mxu0 0.0
  %192 = vmatprep.subr.mxu0 0.0
  %193 = vmatpush2.msra.mxu0 0.0
  %194 = vmatprep.subr.mxu0 0.0
  %195 = vmatpush2.msra.mxu0 0.0
  %196 = vmatprep.subr.mxu0 0.0
  %197 = vmatpush2.msra.mxu0 0.0
  %198 = vmatprep.subr.mxu0 0.0
  %199 = vmatpush2.msra.mxu0 0.0
  %200 = vmatprep.subr.mxu0 0.0
  %201 = vmatpush2.msra.mxu0 0.0
  %202 = vmatprep.subr.mxu0 0.0
  %203 = vmatpush2.msra.mxu0 0.0
  %204 = vmatprep.subr.mxu0 0.0
  %205 = vmatpush2.msra.mxu0 0.0
  %206 = vmatprep.subr.mxu0 0.0
  %207 = vmatpush2.msra.mxu0 0.0
  %208 = vmatprep.mubr.f32.mxu0 0.0
  %209 = vmatmul.mubr.f32.gmra.mxu0 %v139
  %v210 = vpop.f32.mrf.mxu0
  %v211 = vadd.f32 %v135, %v210
  %v212 = vpop.f32.mrf.mxu0
  %213 = vmatprep.mubr.f32.mxu0 0.0
  %214 = vmatmul.mubr.f32.gmra.mxu0 %v142
  %v215 = vpop.f32.mrf.mxu0
  %v216 = vadd.f32 %v135, %v215
  %v217 = vpop.f32.mrf.mxu0
  %218 = vdwg.mxu0
  %219 = vst.msk [vmem:[%s5] sm:$0xff] %vm30, %v211
  %220 = vst.msk [vmem:[%s5 + $0x8] sm:$0xff] %vm30, %v216
  // Predicated region
  $region22: #{tpu_custom_call.1} parent=0 // pred_check
    _
  $region23: #{tpu_custom_call.1} parent=0 // pred_check_branch
    %222 = sbr.rel (0) target = $region25
  $region24: #{tpu_custom_call.1} parent=0 // pred_region
    _
  $region25: #{tpu_custom_call.1} parent=0 // pred_fallthru
    _
  // Predicated region
  $region26: #{tpu_custom_call.1} parent=0 // pred_check
    _
  $region27: #{tpu_custom_call.1} parent=0 // pred_check_branch
    %224 = sbr.rel (0) target = $region29
  $region28: #{tpu_custom_call.1} parent=0 // pred_region
    _
  $region29: #{tpu_custom_call.1} parent=0 // pred_fallthru
    _

</llo_original>
